<compile_context>
chip_gen: v7x
topology: tpu7x:2x2x1
jax: 0.10.0
libtpu: 0.0.40
codegen_flags: <defaults>
</compile_context>

<pallas_src>
import functools

import jax
import jax.numpy as jnp
from jax.experimental import pallas as pl
from jax.experimental.pallas import tpu as pltpu


def _round_up(x, m):
    return (x + m - 1) // m * m


def _deepnet_kernel(x_ref, wt_ref, b_ref, o_ref, *, compute_dtype):
    # x: (tm, d_in) caller dtype; wt: (d_in, d_out) compute_dtype (pre-
    # transposed once in the wrapper); b: (1, d_out) f32.
    x = x_ref[...]
    if x.dtype != compute_dtype:
        x = x.astype(compute_dtype)          # in-VMEM cast; no extra HBM pass
    acc = jnp.dot(x, wt_ref[...], preferred_element_type=jnp.float32)
    o_ref[...] = (acc + b_ref[...]).astype(o_ref.dtype)


def deepnet_forward(x, weight, bias, *, tm_max=8192,
                    compute_dtype=jnp.bfloat16, out_dtype=jnp.float32):
    """y = x @ weight.T + bias  (the single Linear layer DeepNet builds).

    x: (B, d_in); weight: (d_out, d_in) (PyTorch layout); bias: (d_out,).
    Pass x already in `compute_dtype` to halve the dominant HBM read; f32 x
    is accepted and cast per-tile inside the kernel (no extra HBM pass).
    """
    B, d_in = x.shape
    d_out = weight.shape[0]

    # One-time tiny wrapper prep (a few KB): transpose + cast W so the kernel
    # never needs a per-grid-step transpose; keep the bias add in f32.
    wt = weight.T.astype(compute_dtype)               # (d_in, d_out)
    b2 = bias.astype(jnp.float32).reshape(1, d_out)

    # --- batch tile: largest tile whose double-buffered x/out blocks plus
    # the resident W/b fit a ~16 MiB working set (lane-padding aware) -------
    lane = 128
    x_isz = jnp.dtype(x.dtype).itemsize
    o_isz = jnp.dtype(out_dtype).itemsize
    w_isz = jnp.dtype(compute_dtype).itemsize
    d_in_l = _round_up(d_in, lane)       # (tm, d_in) block is lane-padded
    d_out_l = _round_up(d_out, lane)     # (tm, d_out) block is lane-padded
    per_row = 2 * (d_in_l * x_isz + d_out_l * o_isz)          # 2x buffers
    fixed = 2 * (_round_up(d_in, 16) * d_out_l * w_isz + 8 * d_out_l * 4)
    budget = 16 * 1024 * 1024
    tm_fit = max(16, (budget - fixed) // max(per_row, 1))
    tm = int(min(tm_max, _round_up(B, 16), tm_fit))
    tm = max(16, (tm // 16) * 16)        # multiple of 16: bf16 sublane packing

    grid = pl.cdiv(B, tm)                # no wrapper pad of x; ragged last
                                         # block's extra rows are masked stores

    vmem_need = fixed + tm * per_row
    vmem_limit = int(min(max(vmem_need + (4 << 20), 8 << 20), 32 << 20))

    cost = pl.CostEstimate(
        flops=2 * B * d_in * d_out,
        transcendentals=0,
        bytes_accessed=int(B * d_in * x_isz + d_in * d_out * w_isz
                           + d_out * 4 + B * d_out * o_isz),
    )

    kernel = functools.partial(_deepnet_kernel, compute_dtype=compute_dtype)

    return pl.pallas_call(
        kernel,
        out_shape=jax.ShapeDtypeStruct((B, d_out), out_dtype),
        grid_spec=pl.GridSpec(
            grid=(grid,),
            in_specs=[
                pl.BlockSpec((tm, d_in), lambda i: (i, 0)),      # x tiles
                pl.BlockSpec((d_in, d_out), lambda i: (0, 0)),   # W resident
                pl.BlockSpec((1, d_out), lambda i: (0, 0)),      # b resident
            ],
            out_specs=pl.BlockSpec((tm, d_out), lambda i: (i, 0)),
        ),
        compiler_params=pltpu.CompilerParams(
            dimension_semantics=("parallel",),   # shards batch over v7x's 2 TCs
            vmem_limit_bytes=vmem_limit,
        ),
        cost_estimate=cost,
    )(x, wt, b2)


if __name__ == "__main__":
    # Small shapes consistent with a fully-connected net: (batch, d_inputs).
    B, d_inputs, d_outputs = 8, 32, 16

    key = jax.random.PRNGKey(0)
    kx, kw, kb = jax.random.split(key, 3)

    # kaiming_normal_(mode='fan_in'): std = sqrt(2 / fan_in), weight (out, in).
    w_std = (2.0 / d_inputs) ** 0.5
    weight = jax.random.normal(kw, (d_outputs, d_inputs), dtype=jnp.float32) * w_std
    # nn.Linear default bias init: U(-1/sqrt(fan_in), 1/sqrt(fan_in))
    bound = 1.0 / (d_inputs ** 0.5)
    bias = jax.random.uniform(kb, (d_outputs,), minval=-bound, maxval=bound,
                              dtype=jnp.float32)

    x = jax.random.normal(kx, (B, d_inputs), dtype=jnp.float32)

    y = deepnet_forward(x, weight, bias)
    y = jax.block_until_ready(y)

    # Cross-check against plain-JAX f32 reference (tolerance covers the bf16
    # compute path; accumulation/bias stay f32).
    y_ref = x @ weight.T + bias
    assert y.shape == (B, d_outputs)
    assert jnp.allclose(y, y_ref, atol=5e-2, rtol=5e-2), \
        float(jnp.max(jnp.abs(y - y_ref)))

    print("KERNEL_OK")
</pallas_src>

<mosaic_0001>
module attributes {stable_mosaic.version = 11 : i64} {
  func.func @_deepnet_kernel(%arg0: i32, %arg1: memref<16x32xf32, #tpu.memory_space<vmem>>, %arg2: memref<32x16xbf16, #tpu.memory_space<vmem>>, %arg3: memref<1x16xf32, #tpu.memory_space<vmem>>, %arg4: memref<16x16xf32, #tpu.memory_space<vmem>>) attributes {dimension_semantics = [#tpu.dimension_semantics<parallel>], iteration_bounds = array<i64: 1>, scalar_prefetch = 0 : i64, scratch_operands = 0 : i64, tpu.core_type = #tpu.core_type<tc>, window_params = [{transform_indices = @transform_0, window_bounds = array<i64: 16, 32>}, {pipeline_mode = #tpu.pipeline_mode<synchronous>, transform_indices = @transform_1, window_bounds = array<i64: 32, 16>}, {pipeline_mode = #tpu.pipeline_mode<synchronous>, transform_indices = @transform_2, window_bounds = array<i64: 1, 16>}, {transform_indices = @transform_3, window_bounds = array<i64: 16, 16>}]} {
    %c0 = arith.constant 0 : index
    %c0_0 = arith.constant 0 : index
    %0 = vector.load %arg1[%c0, %c0_0] : memref<16x32xf32, #tpu.memory_space<vmem>>, vector<16x32xf32>
    %1 = arith.truncf %0 : vector<16x32xf32> to vector<16x32xbf16>
    %c0_1 = arith.constant 0 : index
    %c0_2 = arith.constant 0 : index
    %2 = vector.load %arg2[%c0_1, %c0_2] : memref<32x16xbf16, #tpu.memory_space<vmem>>, vector<32x16xbf16>
    %cst = arith.constant dense<0.000000e+00> : vector<16x16xf32>
    %3 = tpu.matmul %1, %2, %cst {dimension_numbers = #tpu.dot_dimension_numbers<[1], [0], [0], [1], [0, 0, 1, 1], [], []>} : vector<16x32xbf16>, vector<32x16xbf16>, vector<16x16xf32> -> vector<16x16xf32>
    %c0_3 = arith.constant 0 : index
    %c0_4 = arith.constant 0 : index
    %4 = vector.load %arg3[%c0_3, %c0_4] : memref<1x16xf32, #tpu.memory_space<vmem>>, vector<1x16xf32>
    %5 = vector.broadcast %4 : vector<1x16xf32> to vector<16x16xf32>
    %6 = arith.addf %3, %5 : vector<16x16xf32>
    %c0_5 = arith.constant 0 : index
    %c0_6 = arith.constant 0 : index
    %7 = vector.load %arg4[%c0_5, %c0_6] : memref<16x16xf32, #tpu.memory_space<vmem>>, vector<16x16xf32>
    tpu.vector_store %arg4[%c0_5, %c0_6], %6 {strides = array<i32>} : memref<16x16xf32, #tpu.memory_space<vmem>>, vector<16x16xf32>,
    return
  }
  func.func @transform_0(%arg0: i32) -> (i32, i32) {
    %c0_i32 = arith.constant 0 : i32
    %c0_i32_0 = arith.constant 0 : i32
    return %arg0, %c0_i32 : i32, i32
  }
  func.func @transform_1(%arg0: i32) -> (i32, i32) {
    %c0_i32 = arith.constant 0 : i32
    %c0_i32_0 = arith.constant 0 : i32
    %c0_i32_1 = arith.constant 0 : i32
    return %c0_i32, %c0_i32_0 : i32, i32
  }
  func.func @transform_2(%arg0: i32) -> (i32, i32) {
    %c0_i32 = arith.constant 0 : i32
    %c0_i32_0 = arith.constant 0 : i32
    %c0_i32_1 = arith.constant 0 : i32
    return %c0_i32, %c0_i32_0 : i32, i32
  }
  func.func @transform_3(%arg0: i32) -> (i32, i32) {
    %c0_i32 = arith.constant 0 : i32
    %c0_i32_0 = arith.constant 0 : i32
    return %arg0, %c0_i32 : i32, i32
  }
}

</mosaic_0001>

<llo_original>
// kernel: tpu_custom_call.1
$region0: #{tpu_custom_call.1}
  #allocation0 [shape = 'u32[]', space=smem, size = 0x4, offset = 0x4, fixed_abs, tag = 'smem constant byte address 0x4 - core index']
  #allocation1 [shape = 'u32[144,128]{1,0:T(1,128)}', space=vmem, size = 0x12000, scoped, tag = 'internal scratch']
  %s0 = inlined_call_operand.vmem [shape: f32[8,32], index: 0, kind: input, shape index: {}]
  %s1 = inlined_call_operand.vmem [shape: bf16[32,16], index: 1, kind: input, shape index: {}]
  %s2 = inlined_call_operand.vmem [shape: f32[1,16], index: 2, kind: input, shape index: {}]
  %s3 = inlined_call_operand.hbm [shape: f32[8,16], index: 3, kind: output, shape index: {}]
  %s4 = sld [smem:[#allocation0]]
  $region22: #{tpu_custom_call.1} parent=0
    _
  %s6 = ssub.s32 1, %s4
  %s7 = scalar_select 0, %s6, %s4
  $region1: #{tpu_custom_call.1} parent=0
    #allocation2 [shape = 'u8[8192]{0}', space=vmem, size = 0x2000, scoped, tag = 'output window, operand 0, single buffered']
    #allocation3 [shape = 's32[1]{0}', space=sflag, size = 0x4, scoped, tag = 'scoped memory for tpu_custom_call.1']
    %8 = vsyncpa [#allocation3], 0
    // Predicated region
    $region2: #{tpu_custom_call.1} parent=1 // pred_check
      _
    $region3: #{tpu_custom_call.1} parent=1 // pred_check_branch
      %10 = sbr.rel (0) target = $region5
    $region4: #{tpu_custom_call.1} parent=1 // pred_region
      _
    $region5: #{tpu_custom_call.1} parent=1 // pred_fallthru
      _
    // Predicated region
    $region6: #{tpu_custom_call.1} parent=1 // pred_check
      _
    $region7: #{tpu_custom_call.1} parent=1 // pred_check_branch
      %12 = sbr.rel (0) target = $region9
    $region8: #{tpu_custom_call.1} parent=1 // pred_region
      _
    $region9: #{tpu_custom_call.1} parent=1 // pred_fallthru
      _
    // Predicated region
    $region10: #{tpu_custom_call.1} parent=1 // pred_check
      _
    $region11: #{tpu_custom_call.1} parent=1 // pred_check_branch
      %14 = sbr.rel (0) target = $region13
    $region12: #{tpu_custom_call.1} parent=1 // pred_region
      _
    $region13: #{tpu_custom_call.1} parent=1 // pred_fallthru
      _
    %v16 = vld [vmem:[%s0] sm:$0xff]
    %v17 = vld [vmem:[%s0 + $0x8] sm:$0xff]
    %v18 = vpack.c.bf16 %v17, %v16
    %v19 = vld [vmem:[%s1] sm:$0xf]
    %v20 = vld [vmem:[%s1 + $0x4] sm:$0xf]
    %v21 = vld [vmem:[%s1 + $0x8] sm:$0xf]
    %v22 = vld [vmem:[%s1 + $0xc] sm:$0xf]
    %v23 = vld [vmem:[%s2] sm:$0x1]
    %v25 = vlaneseq
    %v26 = vshrl.u32 %v25, 7
    %v27 = vsub.s32 0, %v26
    %v28 = vrot.slane %v23, %v27
    %v34 = vunpack.c.l.b16 %v19
    %v35 = vunpack.c.l.b16 %v20
    %v36 = vunpack.c.l.b16 %v21
    %v37 = vunpack.c.l.b16 %v22
    %v38 = vpack.c.b16 %v35, %v34
    %v39 = vpack.c.b16 %v37, %v36
    %vm42 = vcmask 261120
    %v44 = vsel %vm42, %v18, 0
    %46 = vmatprep.subr.bf16.mxu0 0
    %47 = vmatpush1.bf16.msra.mxu0 %v38
    %48 = vmatprep.subr.bf16.mxu0 0
    %49 = vmatpush1.bf16.msra.mxu0 %v39
    %50 = vmatprep.subr.bf16.mxu0 0
    %51 = vmatpush1.bf16.msra.mxu0 0
    %52 = vmatprep.subr.bf16.mxu0 0
    %53 = vmatpush1.bf16.msra.mxu0 0
    %54 = vmatprep.subr.bf16.mxu0 0
    %55 = vmatpush1.bf16.msra.mxu0 0
    %56 = vmatprep.subr.bf16.mxu0 0
    %57 = vmatpush1.bf16.msra.mxu0 0
    %58 = vmatprep.subr.bf16.mxu0 0
    %59 = vmatpush1.bf16.msra.mxu0 0
    %60 = vmatprep.subr.bf16.mxu0 0
    %61 = vmatpush1.bf16.msra.mxu0 0
    %62 = vmatprep.subr.bf16.mxu0 0
    %63 = vmatpush1.bf16.msra.mxu0 0
    %64 = vmatprep.subr.bf16.mxu0 0
    %65 = vmatpush1.bf16.msra.mxu0 0
    %66 = vmatprep.subr.bf16.mxu0 0
    %67 = vmatpush1.bf16.msra.mxu0 0
    %68 = vmatprep.subr.bf16.mxu0 0
    %69 = vmatpush1.bf16.msra.mxu0 0
    %70 = vmatprep.subr.bf16.mxu0 0
    %71 = vmatpush1.bf16.msra.mxu0 0
    %72 = vmatprep.subr.bf16.mxu0 0
    %73 = vmatpush1.bf16.msra.mxu0 0
    %74 = vmatprep.subr.bf16.mxu0 0
    %75 = vmatpush1.bf16.msra.mxu0 0
    %76 = vmatprep.subr.bf16.mxu0 0
    %77 = vmatpush1.bf16.msra.mxu0 0
    %78 = vmatprep.mubr.bf16.mxu0 0
    %79 = vmatmul.mubr.bf16.gmra.mrb[0].mxu0 %v44
    %v80 = vpop.f32.mrb[0].mxu0
    %v81 = vadd.f32 %v28, %v80
    %v82 = vpop.f32.mrb[0].mxu0
    %v83 = vpop.f32.mrb[0].mxu0
    %v84 = vadd.f32 %v28, %v83
    %v85 = vpop.f32.mrb[0].mxu0
    %86 = vdwg.mxu0
    %vm87 = vcmask 130048
    %88 = vst.msk [vmem:[#allocation2] sm:$0xff] %vm87, %v81
    %89 = vst.msk [vmem:[#allocation2 + $0x8] sm:$0xff] %vm87, %v84
    // Predicated region
    $region14: #{tpu_custom_call.1} parent=1 // pred_check
      _
    $region15: #{tpu_custom_call.1} parent=1 // pred_check_branch
      %91 = sbr.rel (0) target = $region17
    $region16: #{tpu_custom_call.1} parent=1 // pred_region
      %s93 = ssub.s32 256, 128
      %94 = vsyncadd [#allocation3], %s93
      %s95 = sshll.u32 [#allocation2], 4
      %s96 = int_to_ptr.vmem [resolvable:$true] %s95
      %101 = dma.vmem_to_hbm [thread:$0]  %s96, 128, %s3, [#allocation3], 128, 128, 8
    $region17: #{tpu_custom_call.1} parent=1 // pred_fallthru
      _
    // Predicated region
    $region18: #{tpu_custom_call.1} parent=1 // pred_check
      _
    $region19: #{tpu_custom_call.1} parent=1 // pred_check_branch
      %103 = sbr.rel (0) target = $region21
    $region20: #{tpu_custom_call.1} parent=1 // pred_region
      %104 = dma.done [#allocation3], 256
    $region21: #{tpu_custom_call.1} parent=1 // pred_fallthru
      _
    %105 = vsyncpa [#allocation3], 1

</llo_original>
